<compile_context>
chip_gen: v6e
topology: v6e:2x2x1
jax: 0.10.0
libtpu: 0.0.40
codegen_flags: <defaults>
</compile_context>

<pallas_src>
import math

import jax
import jax.numpy as jnp
from jax import lax
from jax.experimental import pallas as pl
from jax.experimental.pallas import tpu as pltpu

NUM_FEATURES = 20   # len(features_col) after pd.get_dummies on heart.csv
H1, H2, OUT = 64, 32, 2


def _round_up(n, m):
    return ((n + m - 1) // m) * m


def _cdiv(a, b):
    return (a + b - 1) // b


def _pick_batch_tile(B):
    """Pick a batch tile that amortizes per-step overhead and fills the MXU.

    - Large tiles (>=128 rows, up to 4096) amortize the ~0.35us/grid-step
      pipeline overhead and saturate the MXU M dimension.
    - Cap at 4096 rows (~a few MiB of f32 activations/step) so v7x's 64 MiB
      VMEM has plenty of headroom; v5e/v6e trivially fit.
    - Keep >= 2 grid steps when the batch allows so both v7x TensorCores get
      work and the x-tile DMA overlaps compute.
    - Multiple of 128 so the transposed output block is lane-dense/unmasked.
    """
    if B <= 128:
        return _round_up(max(B, 8), 8)       # single step; tile == padded batch
    n_steps = max(2, _cdiv(B, 4096))
    return min(4096, _round_up(_cdiv(B, n_steps), 128))


def _mlp_kernel(x_ref, w1_ref, b1_ref, w2_ref, b2_ref, w3_ref, b3t_ref, o_ref):
    # fc1 + ReLU   (M = batch_tile fills the MXU rows; f32 accumulation)
    h1 = jnp.dot(x_ref[...], w1_ref[...], preferred_element_type=jnp.float32)
    h1 = jnp.maximum(h1 + b1_ref[...], 0.0)
    # fc2 + ReLU
    h2 = jnp.dot(h1, w2_ref[...], preferred_element_type=jnp.float32)
    h2 = jnp.maximum(h2 + b2_ref[...], 0.0)
    # fc3: produce TRANSPOSED logits (OUT, batch_tile) so the store is
    # lane-dense (batch on the 128-lane axis) instead of a 2-lane masked store.
    logits_t = lax.dot_general(
        w3_ref[...], h2,
        dimension_numbers=(((0,), (1,)), ((), ())),
        preferred_element_type=jnp.float32)
    o_ref[...] = logits_t + b3t_ref[...]


def heart_disease_forward(x, params, *, batch_tile=None, use_bf16=False):
    """x: [B, NUM_FEATURES] float32 -> logits [B, 2] float32."""
    w1, b1, w2, b2, w3, b3 = params
    B, F = x.shape
    assert F == NUM_FEATURES

    if batch_tile is None:
        batch_tile = _pick_batch_tile(B)
    else:
        batch_tile = max(8, _round_up(batch_tile, 8))

    Bp = _round_up(B, batch_tile)
    grid_len = Bp // batch_tile
    # Lane-dense transposed output block needs its lane dim to be a multiple of
    # 128 unless there is a single grid step (block == full array).
    if grid_len > 1 and batch_tile % 128 != 0:
        batch_tile = _round_up(batch_tile, 128)
        Bp = _round_up(B, batch_tile)
        grid_len = Bp // batch_tile

    if Bp != B:
        x = jnp.pad(x, ((0, Bp - B), (0, 0)))

    if use_bf16:
        # x is the only HBM operand that scales with B; halving its bytes is
        # ~2x on the mem-bound roofline. Accumulation stays f32 in the kernel.
        x = x.astype(jnp.bfloat16)
        w1 = w1.astype(jnp.bfloat16)

    b3t = b3.T  # (OUT, 1): bias laid out for the transposed logits

    def rep(shape):
        # Constant across the grid (block index always (0,0)) -> stays resident
        # in VMEM; Pallas does not re-DMA it between steps. Total ~14 KB.
        return pl.BlockSpec(shape, lambda i: (0, 0))

    out_t = pl.pallas_call(
        _mlp_kernel,
        out_shape=jax.ShapeDtypeStruct((OUT, Bp), jnp.float32),
        grid_spec=pltpu.PrefetchScalarGridSpec(
            num_scalar_prefetch=0,
            grid=(grid_len,),
            in_specs=[
                pl.BlockSpec((batch_tile, F), lambda i: (i, 0)),  # x tile
                rep((F, H1)),    # W1
                rep((1, H1)),    # b1
                rep((H1, H2)),   # W2
                rep((1, H2)),    # b2
                rep((H2, OUT)),  # W3
                rep((OUT, 1)),   # b3 (transposed)
            ],
            out_specs=pl.BlockSpec((OUT, batch_tile), lambda i: (0, i)),
        ),
        compiler_params=pltpu.CompilerParams(
            dimension_semantics=("parallel",)),
    )(x, w1, b1, w2, b2, w3, b3t)

    # (OUT, Bp) -> (B, OUT): trivial XLA transpose + drop padded rows.
    return out_t.T[:B]


def init_params(key):
    """Deterministic synthetic params matching nn.Linear default init
    (uniform in [-1/sqrt(fan_in), 1/sqrt(fan_in)]), stored as [in, out]."""
    def linear(key, fan_in, fan_out):
        kw, kb = jax.random.split(key)
        bound = 1.0 / math.sqrt(fan_in)
        w = jax.random.uniform(kw, (fan_in, fan_out), jnp.float32, -bound, bound)
        b = jax.random.uniform(kb, (1, fan_out), jnp.float32, -bound, bound)
        return w, b

    k1, k2, k3 = jax.random.split(key, 3)
    w1, b1 = linear(k1, NUM_FEATURES, H1)
    w2, b2 = linear(k2, H1, H2)
    w3, b3 = linear(k3, H2, OUT)
    return (w1, b1, w2, b2, w3, b3)


def _reference(x, params):
    w1, b1, w2, b2, w3, b3 = params
    h1 = jnp.maximum(x @ w1 + b1, 0.0)
    h2 = jnp.maximum(h1 @ w2 + b2, 0.0)
    return h2 @ w3 + b3


if __name__ == "__main__":
    key = jax.random.PRNGKey(0)
    kx, kp = jax.random.split(key)

    # B deliberately not a multiple of the tile to exercise the padding path;
    # auto tile -> 128, grid=(2,).
    B = 250
    x = jax.random.normal(kx, (B, NUM_FEATURES), jnp.float32)
    params = init_params(kp)

    out = heart_disease_forward(x, params)
    out = jax.block_until_ready(out)

    ref = _reference(x, params)
    assert out.shape == (B, OUT)
    # f32 MXU accumulation vs XLA default matmul precision can differ slightly.
    assert jnp.allclose(out, ref, atol=1e-4, rtol=1e-4), "mismatch vs JAX reference"

    print("KERNEL_OK")
</pallas_src>

<mosaic_0001>
module attributes {stable_mosaic.version = 11 : i64} {
  func.func @_mlp_kernel(%arg0: i32, %arg1: memref<128x20xf32, #tpu.memory_space<vmem>>, %arg2: memref<20x64xf32, #tpu.memory_space<vmem>>, %arg3: memref<1x64xf32, #tpu.memory_space<vmem>>, %arg4: memref<64x32xf32, #tpu.memory_space<vmem>>, %arg5: memref<1x32xf32, #tpu.memory_space<vmem>>, %arg6: memref<32x2xf32, #tpu.memory_space<vmem>>, %arg7: memref<2x1xf32, #tpu.memory_space<vmem>>, %arg8: memref<2x128xf32, #tpu.memory_space<vmem>>) attributes {dimension_semantics = [#tpu.dimension_semantics<parallel>], iteration_bounds = array<i64: 2>, scalar_prefetch = 0 : i64, scratch_operands = 0 : i64, tpu.core_type = #tpu.core_type<tc>, window_params = [{transform_indices = @transform_0, window_bounds = array<i64: 128, 20>}, {pipeline_mode = #tpu.pipeline_mode<synchronous>, transform_indices = @transform_1, window_bounds = array<i64: 20, 64>}, {pipeline_mode = #tpu.pipeline_mode<synchronous>, transform_indices = @transform_2, window_bounds = array<i64: 1, 64>}, {pipeline_mode = #tpu.pipeline_mode<synchronous>, transform_indices = @transform_3, window_bounds = array<i64: 64, 32>}, {pipeline_mode = #tpu.pipeline_mode<synchronous>, transform_indices = @transform_4, window_bounds = array<i64: 1, 32>}, {pipeline_mode = #tpu.pipeline_mode<synchronous>, transform_indices = @transform_5, window_bounds = array<i64: 32, 2>}, {pipeline_mode = #tpu.pipeline_mode<synchronous>, transform_indices = @transform_6, window_bounds = array<i64: 2, 1>}, {transform_indices = @transform_7, window_bounds = array<i64: 2, 128>}]} {
    %c0 = arith.constant 0 : index
    %c0_0 = arith.constant 0 : index
    %0 = vector.load %arg1[%c0, %c0_0] : memref<128x20xf32, #tpu.memory_space<vmem>>, vector<128x20xf32>
    %c0_1 = arith.constant 0 : index
    %c0_2 = arith.constant 0 : index
    %1 = vector.load %arg2[%c0_1, %c0_2] : memref<20x64xf32, #tpu.memory_space<vmem>>, vector<20x64xf32>
    %cst = arith.constant dense<0.000000e+00> : vector<128x64xf32>
    %2 = tpu.matmul %0, %1, %cst {dimension_numbers = #tpu.dot_dimension_numbers<[1], [0], [0], [1], [0, 0, 1, 1], [], []>} : vector<128x20xf32>, vector<20x64xf32>, vector<128x64xf32> -> vector<128x64xf32>
    %c0_3 = arith.constant 0 : index
    %c0_4 = arith.constant 0 : index
    %3 = vector.load %arg3[%c0_3, %c0_4] : memref<1x64xf32, #tpu.memory_space<vmem>>, vector<1x64xf32>
    %4 = vector.broadcast %3 : vector<1x64xf32> to vector<128x64xf32>
    %5 = arith.addf %2, %4 : vector<128x64xf32>
    %cst_5 = arith.constant 0.000000e+00 : f32
    %6 = vector.broadcast %cst_5 : f32 to vector<128x64xf32>
    %7 = arith.maximumf %5, %6 : vector<128x64xf32>
    %c0_6 = arith.constant 0 : index
    %c0_7 = arith.constant 0 : index
    %8 = vector.load %arg4[%c0_6, %c0_7] : memref<64x32xf32, #tpu.memory_space<vmem>>, vector<64x32xf32>
    %cst_8 = arith.constant dense<0.000000e+00> : vector<128x32xf32>
    %9 = tpu.matmul %7, %8, %cst_8 {dimension_numbers = #tpu.dot_dimension_numbers<[1], [0], [0], [1], [0, 0, 1, 1], [], []>} : vector<128x64xf32>, vector<64x32xf32>, vector<128x32xf32> -> vector<128x32xf32>
    %c0_9 = arith.constant 0 : index
    %c0_10 = arith.constant 0 : index
    %10 = vector.load %arg5[%c0_9, %c0_10] : memref<1x32xf32, #tpu.memory_space<vmem>>, vector<1x32xf32>
    %11 = vector.broadcast %10 : vector<1x32xf32> to vector<128x32xf32>
    %12 = arith.addf %9, %11 : vector<128x32xf32>
    %cst_11 = arith.constant 0.000000e+00 : f32
    %13 = vector.broadcast %cst_11 : f32 to vector<128x32xf32>
    %14 = arith.maximumf %12, %13 : vector<128x32xf32>
    %c0_12 = arith.constant 0 : index
    %c0_13 = arith.constant 0 : index
    %15 = vector.load %arg6[%c0_12, %c0_13] : memref<32x2xf32, #tpu.memory_space<vmem>>, vector<32x2xf32>
    %cst_14 = arith.constant dense<0.000000e+00> : vector<2x128xf32>
    %16 = tpu.matmul %15, %14, %cst_14 {dimension_numbers = #tpu.dot_dimension_numbers<[0], [1], [1], [0], [0, 1, 1, 0], [], []>} : vector<32x2xf32>, vector<128x32xf32>, vector<2x128xf32> -> vector<2x128xf32>
    %c0_15 = arith.constant 0 : index
    %c0_16 = arith.constant 0 : index
    %17 = vector.load %arg7[%c0_15, %c0_16] : memref<2x1xf32, #tpu.memory_space<vmem>>, vector<2x1xf32>
    %18 = vector.broadcast %17 : vector<2x1xf32> to vector<2x128xf32>
    %19 = arith.addf %16, %18 : vector<2x128xf32>
    %c0_17 = arith.constant 0 : index
    %c0_18 = arith.constant 0 : index
    %20 = vector.load %arg8[%c0_17, %c0_18] : memref<2x128xf32, #tpu.memory_space<vmem>>, vector<2x128xf32>
    tpu.vector_store %arg8[%c0_17, %c0_18], %19 {strides = array<i32>} : memref<2x128xf32, #tpu.memory_space<vmem>>, vector<2x128xf32>,
    return
  }
  func.func @transform_0(%arg0: i32) -> (i32, i32) {
    %c0_i32 = arith.constant 0 : i32
    %c0_i32_0 = arith.constant 0 : i32
    return %arg0, %c0_i32 : i32, i32
  }
  func.func @transform_1(%arg0: i32) -> (i32, i32) {
    %c0_i32 = arith.constant 0 : i32
    %c0_i32_0 = arith.constant 0 : i32
    %c0_i32_1 = arith.constant 0 : i32
    return %c0_i32, %c0_i32_0 : i32, i32
  }
  func.func @transform_2(%arg0: i32) -> (i32, i32) {
    %c0_i32 = arith.constant 0 : i32
    %c0_i32_0 = arith.constant 0 : i32
    %c0_i32_1 = arith.constant 0 : i32
    return %c0_i32, %c0_i32_0 : i32, i32
  }
  func.func @transform_3(%arg0: i32) -> (i32, i32) {
    %c0_i32 = arith.constant 0 : i32
    %c0_i32_0 = arith.constant 0 : i32
    %c0_i32_1 = arith.constant 0 : i32
    return %c0_i32, %c0_i32_0 : i32, i32
  }
  func.func @transform_4(%arg0: i32) -> (i32, i32) {
    %c0_i32 = arith.constant 0 : i32
    %c0_i32_0 = arith.constant 0 : i32
    %c0_i32_1 = arith.constant 0 : i32
    return %c0_i32, %c0_i32_0 : i32, i32
  }
  func.func @transform_5(%arg0: i32) -> (i32, i32) {
    %c0_i32 = arith.constant 0 : i32
    %c0_i32_0 = arith.constant 0 : i32
    %c0_i32_1 = arith.constant 0 : i32
    return %c0_i32, %c0_i32_0 : i32, i32
  }
  func.func @transform_6(%arg0: i32) -> (i32, i32) {
    %c0_i32 = arith.constant 0 : i32
    %c0_i32_0 = arith.constant 0 : i32
    %c0_i32_1 = arith.constant 0 : i32
    return %c0_i32, %c0_i32_0 : i32, i32
  }
  func.func @transform_7(%arg0: i32) -> (i32, i32) {
    %c0_i32 = arith.constant 0 : i32
    %c0_i32_0 = arith.constant 0 : i32
    return %c0_i32, %arg0 : i32, i32
  }
}

</mosaic_0001>

<llo_original>
// kernel: tpu_custom_call.1
$region0: #{tpu_custom_call.1}
  #allocation0 [shape = 'u32[]', space=smem, size = 0x4, offset = 0x4, fixed_abs, tag = 'smem constant byte address 0x4 - core index']
  #allocation1 [shape = 'u32[144,128]{1,0:T(1,128)}', space=vmem, size = 0x12000, scoped, tag = 'internal scratch']
  %s0 = inlined_call_operand.vmem [shape: f32[256,20], index: 0, kind: input, shape index: {}]
  %s1 = inlined_call_operand.vmem [shape: f32[20,64], index: 1, kind: input, shape index: {}]
  %s2 = inlined_call_operand.vmem [shape: f32[1,64], index: 2, kind: input, shape index: {}]
  %s3 = inlined_call_operand.vmem [shape: f32[64,32], index: 3, kind: input, shape index: {}]
  %s4 = inlined_call_operand.vmem [shape: f32[1,32], index: 4, kind: input, shape index: {}]
  %s5 = inlined_call_operand.vmem [shape: f32[32,2], index: 5, kind: input, shape index: {}]
  %s6 = inlined_call_operand.vmem [shape: f32[2,1], index: 6, kind: input, shape index: {}]
  %s7 = inlined_call_operand.hbm [shape: f32[2,256], index: 7, kind: output, shape index: {}]
  %s8 = sld [smem:[#allocation0]]
  $region61: #{tpu_custom_call.1} parent=0
    _
  %s10 = ssub.s32 1, %s8
  %s11 = scalar_select 0, %s10, %s8
  $region1: #{tpu_custom_call.1} parent=0
    #allocation2 [shape = 'u8[2048]{0}', space=vmem, size = 0x800, scoped, tag = 'output window, operand 0']
    #allocation3 [shape = 's32[2]{0}', space=sflag, size = 0x8, scoped, tag = 'scoped memory for tpu_custom_call.1']
    %12 = vsyncpa [#allocation3], 0
    %s13 = scalar_lea.sflag [#allocation3], 1
    %14 = vsyncpa %s13, 0
    loop: start=0, step=1, limit=4
    $region2: #{tpu_custom_call.1} parent=1 // loop_pre_header
      _
    $region3: #{tpu_custom_call.1} parent=1 // loop_header
      %s16 = sphi 0, %s20
      %p17 = scmp.ge.s32.totalorder %s16, 4
      %s26 = sphi 0, %s28
      %s29 = sphi 0, %s26
      %s30 = sphi 0, %s29
      %s46 = sphi 0, %s30
      %s50 = sphi 0, %s50
      %s52 = sphi 0, %s50
      %s53 = sphi 0, %s52
      %s67 = sphi 0, %s53
      %s71 = sphi 0, %s71
      %s73 = sphi 0, %s71
      %s74 = sphi 0, %s73
      %s88 = sphi 0, %s74
      %s92 = sphi 0, %s92
      %s94 = sphi 0, %s92
      %s95 = sphi 0, %s94
      %s109 = sphi 0, %s95
      %s113 = sphi 0, %s113
      %s115 = sphi 0, %s113
      %s116 = sphi 0, %s115
      %s130 = sphi 0, %s116
      %s134 = sphi 0, %s134
      %s136 = sphi 0, %s134
      %s137 = sphi 0, %s136
      %s151 = sphi 0, %s137
      %s155 = sphi 0, %s155
      %s157 = sphi 0, %s155
      %s158 = sphi 0, %s157
      %s172 = sphi 0, %s158
      %s178 = sphi 0, %s180
      %s181 = sphi 0, %s178
      %s182 = sphi 0, %s181
      %s198 = sphi 0, %s182
    $region4: #{tpu_custom_call.1} parent=1 // loop_header_branch
      %19 = sbr.rel (%p17) target = $region8
    $region5: #{tpu_custom_call.1} parent=1 // loop_body
      %s21 = ssub.s32 %s16, 1
      %s22 = ssub.s32 %s16, 2
      %s23 = sadd.s32 %s16, 1
      %s24 = ssub.s32 %s16, %s23
      %p25 = scmp.eq.s32.totalorder %s24, 0
      %s27 = sadd.s32 %s26, 1
      %s28 = scalar_select %p25, %s26, %s27
      %p31 = pneg %p25
      %p32 = scmp.eq.s32.totalorder %s16, 1
      %p33 = por %p31, %p32
      %p34 = scmp.ne.s32.totalorder %s26, %s29
      %p35 = scmp.eq.s32.totalorder %s16, 0
      %p36 = por %p34, %p35
      %p37 = scmp.ne.s32.totalorder %s26, %s29
      %p38 = scmp.eq.s32.totalorder %s21, 1
      %p39 = por %p37, %p38
      %p40 = scmp.ne.s32.totalorder %s29, %s30
      %p41 = scmp.eq.s32.totalorder %s21, 0
      %p42 = por %p40, %p41
      %p43 = scmp.ne.s32.totalorder %s29, %s30
      %p44 = scmp.eq.s32.totalorder %s22, 1
      %p45 = por %p43, %p44
      %p47 = scmp.ne.s32.totalorder %s30, %s46
      %p48 = scmp.eq.s32.totalorder %s22, 0
      %p49 = por %p47, %p48
      %s51 = sadd.s32 %s50, 1
      %p54 = scmp.eq.s32.totalorder %s16, 1
      %p55 = scmp.ne.s32.totalorder %s50, %s52
      %p56 = scmp.eq.s32.totalorder %s16, 0
      %p57 = por %p55, %p56
      %p58 = scmp.ne.s32.totalorder %s50, %s52
      %p59 = scmp.eq.s32.totalorder %s21, 1
      %p60 = por %p58, %p59
      %p61 = scmp.ne.s32.totalorder %s52, %s53
      %p62 = scmp.eq.s32.totalorder %s21, 0
      %p63 = por %p61, %p62
      %p64 = scmp.ne.s32.totalorder %s52, %s53
      %p65 = scmp.eq.s32.totalorder %s22, 1
      %p66 = por %p64, %p65
      %p68 = scmp.ne.s32.totalorder %s53, %s67
      %p69 = scmp.eq.s32.totalorder %s22, 0
      %p70 = por %p68, %p69
      %s72 = sadd.s32 %s71, 1
      %p75 = scmp.eq.s32.totalorder %s16, 1
      %p76 = scmp.ne.s32.totalorder %s71, %s73
      %p77 = scmp.eq.s32.totalorder %s16, 0
      %p78 = por %p76, %p77
      %p79 = scmp.ne.s32.totalorder %s71, %s73
      %p80 = scmp.eq.s32.totalorder %s21, 1
      %p81 = por %p79, %p80
      %p82 = scmp.ne.s32.totalorder %s73, %s74
      %p83 = scmp.eq.s32.totalorder %s21, 0
      %p84 = por %p82, %p83
      %p85 = scmp.ne.s32.totalorder %s73, %s74
      %p86 = scmp.eq.s32.totalorder %s22, 1
      %p87 = por %p85, %p86
      %p89 = scmp.ne.s32.totalorder %s74, %s88
      %p90 = scmp.eq.s32.totalorder %s22, 0
      %p91 = por %p89, %p90
      %s93 = sadd.s32 %s92, 1
      %p96 = scmp.eq.s32.totalorder %s16, 1
      %p97 = scmp.ne.s32.totalorder %s92, %s94
      %p98 = scmp.eq.s32.totalorder %s16, 0
      %p99 = por %p97, %p98
      %p100 = scmp.ne.s32.totalorder %s92, %s94
      %p101 = scmp.eq.s32.totalorder %s21, 1
      %p102 = por %p100, %p101
      %p103 = scmp.ne.s32.totalorder %s94, %s95
      %p104 = scmp.eq.s32.totalorder %s21, 0
      %p105 = por %p103, %p104
      %p106 = scmp.ne.s32.totalorder %s94, %s95
      %p107 = scmp.eq.s32.totalorder %s22, 1
      %p108 = por %p106, %p107
      %p110 = scmp.ne.s32.totalorder %s95, %s109
      %p111 = scmp.eq.s32.totalorder %s22, 0
      %p112 = por %p110, %p111
      %s114 = sadd.s32 %s113, 1
      %p117 = scmp.eq.s32.totalorder %s16, 1
      %p118 = scmp.ne.s32.totalorder %s113, %s115
      %p119 = scmp.eq.s32.totalorder %s16, 0
      %p120 = por %p118, %p119
      %p121 = scmp.ne.s32.totalorder %s113, %s115
      %p122 = scmp.eq.s32.totalorder %s21, 1
      %p123 = por %p121, %p122
      %p124 = scmp.ne.s32.totalorder %s115, %s116
      %p125 = scmp.eq.s32.totalorder %s21, 0
      %p126 = por %p124, %p125
      %p127 = scmp.ne.s32.totalorder %s115, %s116
      %p128 = scmp.eq.s32.totalorder %s22, 1
      %p129 = por %p127, %p128
      %p131 = scmp.ne.s32.totalorder %s116, %s130
      %p132 = scmp.eq.s32.totalorder %s22, 0
      %p133 = por %p131, %p132
      %s135 = sadd.s32 %s134, 1
      %p138 = scmp.eq.s32.totalorder %s16, 1
      %p139 = scmp.ne.s32.totalorder %s134, %s136
      %p140 = scmp.eq.s32.totalorder %s16, 0
      %p141 = por %p139, %p140
      %p142 = scmp.ne.s32.totalorder %s134, %s136
      %p143 = scmp.eq.s32.totalorder %s21, 1
      %p144 = por %p142, %p143
      %p145 = scmp.ne.s32.totalorder %s136, %s137
      %p146 = scmp.eq.s32.totalorder %s21, 0
      %p147 = por %p145, %p146
      %p148 = scmp.ne.s32.totalorder %s136, %s137
      %p149 = scmp.eq.s32.totalorder %s22, 1
      %p150 = por %p148, %p149
      %p152 = scmp.ne.s32.totalorder %s137, %s151
      %p153 = scmp.eq.s32.totalorder %s22, 0
      %p154 = por %p152, %p153
      %s156 = sadd.s32 %s155, 1
      %p159 = scmp.eq.s32.totalorder %s16, 1
      %p160 = scmp.ne.s32.totalorder %s155, %s157
      %p161 = scmp.eq.s32.totalorder %s16, 0
      %p162 = por %p160, %p161
      %p163 = scmp.ne.s32.totalorder %s155, %s157
      %p164 = scmp.eq.s32.totalorder %s21, 1
      %p165 = por %p163, %p164
      %p166 = scmp.ne.s32.totalorder %s157, %s158
      %p167 = scmp.eq.s32.totalorder %s21, 0
      %p168 = por %p166, %p167
      %p169 = scmp.ne.s32.totalorder %s157, %s158
      %p170 = scmp.eq.s32.totalorder %s22, 1
      %p171 = por %p169, %p170
      %p173 = scmp.ne.s32.totalorder %s158, %s172
      %p174 = scmp.eq.s32.totalorder %s22, 0
      %p175 = por %p173, %p174
      %s176 = ssub.s32 %s16, %s23
      %p177 = scmp.eq.s32.totalorder %s176, 0
      %s179 = sadd.s32 %s178, 1
      %s180 = scalar_select %p177, %s178, %s179
      %p183 = pneg %p177
      %p184 = scmp.eq.s32.totalorder %s16, 1
      %p185 = por %p183, %p184
      %p186 = scmp.ne.s32.totalorder %s178, %s181
      %p187 = scmp.eq.s32.totalorder %s16, 0
      %p188 = por %p186, %p187
      %p189 = scmp.ne.s32.totalorder %s178, %s181
      %p190 = scmp.eq.s32.totalorder %s21, 1
      %p191 = por %p189, %p190
      %p192 = scmp.ne.s32.totalorder %s181, %s182
      %p193 = scmp.eq.s32.totalorder %s21, 0
      %p194 = por %p192, %p193
      %p195 = scmp.ne.s32.totalorder %s181, %s182
      %p196 = scmp.eq.s32.totalorder %s22, 1
      %p197 = por %p195, %p196
      %p199 = scmp.ne.s32.totalorder %s182, %s198
      %p200 = scmp.eq.s32.totalorder %s22, 0
      %p201 = por %p199, %p200
      %p202 = scmp.le.s32.totalorder 1, %s16
      %p203 = scmp.lt.s32.totalorder %s16, 3
      %p204 = pnand %p202, %p203
      %p205 = pneg %p204
      // Predicated region
      $region9: #{tpu_custom_call.1} parent=5 // pred_check
        _
      $region10: #{tpu_custom_call.1} parent=5 // pred_check_branch
        %207 = sbr.rel (%p204) target = $region12
      $region11: #{tpu_custom_call.1} parent=5 // pred_region
        %s208 = ssub.s32 %s16, 1
        // Predicated region
        $region13: #{tpu_custom_call.1} parent=11 // pred_check
          %p209 = pneg %p63
        $region14: #{tpu_custom_call.1} parent=11 // pred_check_branch
          %211 = sbr.rel (%p209) target = $region16
        $region15: #{tpu_custom_call.1} parent=11 // pred_region
          _
        $region16: #{tpu_custom_call.1} parent=11 // pred_fallthru
          _
        // Predicated region
        $region17: #{tpu_custom_call.1} parent=11 // pred_check
          %p212 = pneg %p84
        $region18: #{tpu_custom_call.1} parent=11 // pred_check_branch
          %214 = sbr.rel (%p212) target = $region20
        $region19: #{tpu_custom_call.1} parent=11 // pred_region
          _
        $region20: #{tpu_custom_call.1} parent=11 // pred_fallthru
          _
        // Predicated region
        $region21: #{tpu_custom_call.1} parent=11 // pred_check
          %p215 = pneg %p105
        $region22: #{tpu_custom_call.1} parent=11 // pred_check_branch
          %217 = sbr.rel (%p215) target = $region24
        $region23: #{tpu_custom_call.1} parent=11 // pred_region
          _
        $region24: #{tpu_custom_call.1} parent=11 // pred_fallthru
          _
        // Predicated region
        $region25: #{tpu_custom_call.1} parent=11 // pred_check
          %p218 = pneg %p126
        $region26: #{tpu_custom_call.1} parent=11 // pred_check_branch
          %220 = sbr.rel (%p218) target = $region28
        $region27: #{tpu_custom_call.1} parent=11 // pred_region
          _
        $region28: #{tpu_custom_call.1} parent=11 // pred_fallthru
          _
        // Predicated region
        $region29: #{tpu_custom_call.1} parent=11 // pred_check
          %p221 = pneg %p147
        $region30: #{tpu_custom_call.1} parent=11 // pred_check_branch
          %223 = sbr.rel (%p221) target = $region32
        $region31: #{tpu_custom_call.1} parent=11 // pred_region
          _
        $region32: #{tpu_custom_call.1} parent=11 // pred_fallthru
          _
        // Predicated region
        $region33: #{tpu_custom_call.1} parent=11 // pred_check
          %p224 = pneg %p168
        $region34: #{tpu_custom_call.1} parent=11 // pred_check_branch
          %226 = sbr.rel (%p224) target = $region36
        $region35: #{tpu_custom_call.1} parent=11 // pred_region
          _
        $region36: #{tpu_custom_call.1} parent=11 // pred_fallthru
          _
      $region12: #{tpu_custom_call.1} parent=5 // pred_fallthru
        _
      %p227 = scmp.lt.s32.totalorder %s16, 2
      // Predicated region
      $region37: #{tpu_custom_call.1} parent=5 // pred_check
        %p228 = pneg %p227
      $region38: #{tpu_custom_call.1} parent=5 // pred_check_branch
        %230 = sbr.rel (%p228) target = $region40
      $region39: #{tpu_custom_call.1} parent=5 // pred_region
        // Predicated region
        $region41: #{tpu_custom_call.1} parent=39 // pred_check
          %p231 = pneg %p36
        $region42: #{tpu_custom_call.1} parent=39 // pred_check_branch
          %233 = sbr.rel (%p231) target = $region44
        $region43: #{tpu_custom_call.1} parent=39 // pred_region
          %s234 = smul.u32 16, %s16
          %p235 = scmp.lt.s32.totalorder %s234, 31
          %s236 = scalar_select %p235, %s234, 31
          %s237 = smul.addr %s236, 8
          %s238 = scalar_lea.vmem %s0, %s237
          %s239 = smul.u32 16, %s16
        $region44: #{tpu_custom_call.1} parent=39 // pred_fallthru
          _
      $region40: #{tpu_custom_call.1} parent=5 // pred_fallthru
        _
      %p240 = scmp.le.s32.totalorder 1, %s16
      %p241 = scmp.lt.s32.totalorder %s16, 3
      %p242 = pnand %p240, %p241
      %p243 = pneg %p242
      // Predicated region
      $region45: #{tpu_custom_call.1} parent=5 // pred_check
        _
      $region46: #{tpu_custom_call.1} parent=5 // pred_check_branch
        %245 = sbr.rel (%p242) target = $region48
      $region47: #{tpu_custom_call.1} parent=5 // pred_region
        %s246 = ssub.s32 %s16, 1
        %s247 = smul.u32 16, %s21
        %p248 = scmp.lt.s32.totalorder %s247, 31
        %s249 = scalar_select %p248, %s247, 31
        %s250 = smul.addr %s249, 8
        %s251 = scalar_lea.vmem %s0, %s250
        %p252 = pneg %p42
        %p253 = pneg %p39
        %p254 = pneg %p63
        %p255 = pneg %p60
        %p256 = pneg %p84
        %p257 = pneg %p81
        %p258 = pneg %p105
        %p259 = pneg %p102
        %p260 = pneg %p126
        %p261 = pneg %p123
        %p262 = pneg %p147
        %p263 = pneg %p144
        %p264 = pneg %p168
        %p265 = pneg %p165
        %p266 = pneg %p194
        %p267 = pneg %p191
        %s268 = sand.u32 %s181, 1
        %s269 = scalar_lea.sflag [#allocation3], %s268
        %s270 = sand.u32 %s181, 1
        %s271 = smul.addr %s270, 2
        %s272 = scalar_lea.vmem [#allocation2], %s271
        %s273 = smul.u32 16, %s21
        %p274 = scmp.lt.s32.totalorder %s273, 31
        %s275 = scalar_select %p274, %s273, 31
        %s276 = smul.addr %s275, 8
        %s277 = scalar_lea.vmem %s0, %s276
        %s278 = smul.u32 16, %s21
        %v279 = vld [vmem:[%s277] sm:$0xff]
        %v280 = vld [vmem:[%s277 + $0x8] sm:$0xff]
        %v281 = vld [vmem:[%s277 + $0x10] sm:$0xff]
        %v282 = vld [vmem:[%s277 + $0x18] sm:$0xff]
        %v283 = vld [vmem:[%s277 + $0x20] sm:$0xff]
        %v284 = vld [vmem:[%s277 + $0x28] sm:$0xff]
        %v285 = vld [vmem:[%s277 + $0x30] sm:$0xff]
        %v286 = vld [vmem:[%s277 + $0x38] sm:$0xff]
        %v287 = vld [vmem:[%s277 + $0x40] sm:$0xff]
        %v288 = vld [vmem:[%s277 + $0x48] sm:$0xff]
        %v289 = vld [vmem:[%s277 + $0x50] sm:$0xff]
        %v290 = vld [vmem:[%s277 + $0x58] sm:$0xff]
        %v291 = vld [vmem:[%s277 + $0x60] sm:$0xff]
        %v292 = vld [vmem:[%s277 + $0x68] sm:$0xff]
        %v293 = vld [vmem:[%s277 + $0x70] sm:$0xff]
        %v294 = vld [vmem:[%s277 + $0x78] sm:$0xff]
        %v295 = vld [vmem:[%s1] sm:$0xff]
        %v296 = vld [vmem:[%s1 + $0x8] sm:$0xff]
        %v297 = vld [vmem:[%s1 + $0x10] sm:$0xf]
        %v298 = vld [vmem:[%s2] sm:$0x1]
        %v300 = vlaneseq
        %v301 = vshrl.u32 %v300, 7
        %v302 = vsub.s32 0, %v301
        %v303 = vrot.slane %v298, %v302
        %vm305 = vcmask 162816
        %v307 = vsel %vm305, %v279, 0
        %v310 = vsel %vm305, %v280, 0
        %v313 = vsel %vm305, %v281, 0
        %v316 = vsel %vm305, %v282, 0
        %v319 = vsel %vm305, %v283, 0
        %v322 = vsel %vm305, %v284, 0
        %v325 = vsel %vm305, %v285, 0
        %v328 = vsel %vm305, %v286, 0
        %v331 = vsel %vm305, %v287, 0
        %v334 = vsel %vm305, %v288, 0
        %v337 = vsel %vm305, %v289, 0
        %v340 = vsel %vm305, %v290, 0
        %v343 = vsel %vm305, %v291, 0
        %v346 = vsel %vm305, %v292, 0
        %v349 = vsel %vm305, %v293, 0
        %v352 = vsel %vm305, %v294, 0
        %vm354 = vcmask 1043456
        %v356 = vsel %vm354, %v297, 0
        %358 = vmatprep.subr.mxu0 0.0
        %359 = vmatpush1.msra.mxu0 0.0
        %360 = vmatprep.subr.mxu0 0.0
        %361 = vmatpush1.msra.mxu0 0.0
        %362 = vmatprep.subr.mxu0 0.0
        %363 = vmatpush1.msra.mxu0 0.0
        %364 = vmatprep.subr.mxu0 0.0
        %365 = vmatpush1.msra.mxu0 0.0
        %366 = vmatprep.subr.mxu0 0.0
        %367 = vmatpush1.msra.mxu0 0.0
        %368 = vmatprep.subr.mxu0 0.0
        %369 = vmatpush1.msra.mxu0 0.0
        %370 = vmatprep.subr.mxu0 0.0
        %371 = vmatpush1.msra.mxu0 0.0
        %372 = vmatprep.subr.mxu0 0.0
        %373 = vmatpush1.msra.mxu0 0.0
        %374 = vmatprep.subr.mxu0 0.0
        %375 = vmatpush1.msra.mxu0 0.0
        %376 = vmatprep.subr.mxu0 0.0
        %377 = vmatpush1.msra.mxu0 0.0
        %378 = vmatprep.subr.mxu0 0.0
        %379 = vmatpush1.msra.mxu0 0.0
        %380 = vmatprep.subr.mxu0 0.0
        %381 = vmatpush1.msra.mxu0 0.0
        %382 = vmatprep.subr.mxu0 0.0
        %383 = vmatpush1.msra.mxu0 0.0
        %384 = vmatprep.subr.mxu0 0.0
        %385 = vmatpush1.msra.mxu0 %v356
        %386 = vmatprep.subr.mxu0 0.0
        %387 = vmatpush1.msra.mxu0 %v296
        %388 = vmatprep.subr.mxu0 0.0
        %389 = vmatpush1.msra.mxu0 %v295
        %390 = vmatprep.subr.mxu0 0.0
        %391 = vmatpush2.msra.mxu0 0.0
        %392 = vmatprep.subr.mxu0 0.0
        %393 = vmatpush2.msra.mxu0 0.0
        %394 = vmatprep.subr.mxu0 0.0
        %395 = vmatpush2.msra.mxu0 0.0
        %396 = vmatprep.subr.mxu0 0.0
        %397 = vmatpush2.msra.mxu0 0.0
        %398 = vmatprep.subr.mxu0 0.0
        %399 = vmatpush2.msra.mxu0 0.0
        %400 = vmatprep.subr.mxu0 0.0
        %401 = vmatpush2.msra.mxu0 0.0
        %402 = vmatprep.subr.mxu0 0.0
        %403 = vmatpush2.msra.mxu0 0.0
        %404 = vmatprep.subr.mxu0 0.0
        %405 = vmatpush2.msra.mxu0 0.0
        %406 = vmatprep.subr.mxu0 0.0
        %407 = vmatpush2.msra.mxu0 0.0
        %408 = vmatprep.subr.mxu0 0.0
        %409 = vmatpush2.msra.mxu0 0.0
        %410 = vmatprep.subr.mxu0 0.0
        %411 = vmatpush2.msra.mxu0 0.0
        %412 = vmatprep.subr.mxu0 0.0
        %413 = vmatpush2.msra.mxu0 0.0
        %414 = vmatprep.subr.mxu0 0.0
        %415 = vmatpush2.msra.mxu0 0.0
        %416 = vmatprep.subr.mxu0 0.0
        %417 = vmatpush2.msra.mxu0 0.0
        %418 = vmatprep.subr.mxu0 0.0
        %419 = vmatpush2.msra.mxu0 0.0
        %420 = vmatprep.subr.mxu0 0.0
        %421 = vmatpush2.msra.mxu0 0.0
        %422 = vmatprep.mubr.f32.mxu0 0.0
        %423 = vmatmul.mubr.f32.gmra.mxu0 %v307
        %v424 = vpop.f32.mrf.mxu0
        %v425 = vadd.f32 %v303, %v424
        %v426 = vpop.f32.mrf.mxu0
        %427 = vmatprep.mubr.f32.mxu0 0.0
        %428 = vmatmul.mubr.f32.gmra.mxu0 %v310
        %v429 = vpop.f32.mrf.mxu0
        %v430 = vadd.f32 %v303, %v429
        %v431 = vpop.f32.mrf.mxu0
        %432 = vmatprep.mubr.f32.mxu0 0.0
        %433 = vmatmul.mubr.f32.gmra.mxu0 %v313
        %v434 = vpop.f32.mrf.mxu0
        %v435 = vadd.f32 %v303, %v434
        %v436 = vpop.f32.mrf.mxu0
        %437 = vmatprep.mubr.f32.mxu0 0.0
        %438 = vmatmul.mubr.f32.gmra.mxu0 %v316
        %v439 = vpop.f32.mrf.mxu0
        %v440 = vadd.f32 %v303, %v439
        %v441 = vpop.f32.mrf.mxu0
        %442 = vmatprep.mubr.f32.mxu0 0.0
        %443 = vmatmul.mubr.f32.gmra.mxu0 %v319
        %v444 = vpop.f32.mrf.mxu0
        %v445 = vadd.f32 %v303, %v444
        %v446 = vpop.f32.mrf.mxu0
        %447 = vmatprep.mubr.f32.mxu0 0.0
        %448 = vmatmul.mubr.f32.gmra.mxu0 %v322
        %v449 = vpop.f32.mrf.mxu0
        %v450 = vadd.f32 %v303, %v449
        %v451 = vpop.f32.mrf.mxu0
        %452 = vmatprep.mubr.f32.mxu0 0.0
        %453 = vmatmul.mubr.f32.gmra.mxu0 %v325
        %v454 = vpop.f32.mrf.mxu0
        %v455 = vadd.f32 %v303, %v454
        %v456 = vpop.f32.mrf.mxu0
        %457 = vmatprep.mubr.f32.mxu0 0.0
        %458 = vmatmul.mubr.f32.gmra.mxu0 %v328
        %v459 = vpop.f32.mrf.mxu0
        %v460 = vadd.f32 %v303, %v459
        %v461 = vpop.f32.mrf.mxu0
        %462 = vmatprep.mubr.f32.mxu0 0.0
        %463 = vmatmul.mubr.f32.gmra.mxu0 %v331
        %v464 = vpop.f32.mrf.mxu0
        %v465 = vadd.f32 %v303, %v464
        %v466 = vpop.f32.mrf.mxu0
        %467 = vmatprep.mubr.f32.mxu0 0.0
        %468 = vmatmul.mubr.f32.gmra.mxu0 %v334
        %v469 = vpop.f32.mrf.mxu0
        %v470 = vadd.f32 %v303, %v469
        %v471 = vpop.f32.mrf.mxu0
        %472 = vmatprep.mubr.f32.mxu0 0.0
        %473 = vmatmul.mubr.f32.gmra.mxu0 %v337
        %v474 = vpop.f32.mrf.mxu0
        %v475 = vadd.f32 %v303, %v474
        %v476 = vpop.f32.mrf.mxu0
        %477 = vmatprep.mubr.f32.mxu0 0.0
        %478 = vmatmul.mubr.f32.gmra.mxu0 %v340
        %v479 = vpop.f32.mrf.mxu0
        %v480 = vadd.f32 %v303, %v479
        %v481 = vpop.f32.mrf.mxu0
        %482 = vmatprep.mubr.f32.mxu0 0.0
        %483 = vmatmul.mubr.f32.gmra.mxu0 %v343
        %v484 = vpop.f32.mrf.mxu0
        %v485 = vadd.f32 %v303, %v484
        %v486 = vpop.f32.mrf.mxu0
        %487 = vmatprep.mubr.f32.mxu0 0.0
        %488 = vmatmul.mubr.f32.gmra.mxu0 %v346
        %v489 = vpop.f32.mrf.mxu0
        %v490 = vadd.f32 %v303, %v489
        %v491 = vpop.f32.mrf.mxu0
        %492 = vmatprep.mubr.f32.mxu0 0.0
        %493 = vmatmul.mubr.f32.gmra.mxu0 %v349
        %v494 = vpop.f32.mrf.mxu0
        %v495 = vadd.f32 %v303, %v494
        %v496 = vpop.f32.mrf.mxu0
        %497 = vmatprep.mubr.f32.mxu0 0.0
        %498 = vmatmul.mubr.f32.gmra.mxu0 %v352
        %v499 = vpop.f32.mrf.mxu0
        %v500 = vadd.f32 %v303, %v499
        %v501 = vpop.f32.mrf.mxu0
        %502 = vdwg.mxu0
        %v503 = vmax.f32 %v425, 0.0
        %v504 = vmax.f32 %v430, 0.0
        %v505 = vmax.f32 %v435, 0.0
        %v506 = vmax.f32 %v440, 0.0
        %v507 = vmax.f32 %v445, 0.0
        %v508 = vmax.f32 %v450, 0.0
        %v509 = vmax.f32 %v455, 0.0
        %v510 = vmax.f32 %v460, 0.0
        %v511 = vmax.f32 %v465, 0.0
        %v512 = vmax.f32 %v470, 0.0
        %v513 = vmax.f32 %v475, 0.0
        %v514 = vmax.f32 %v480, 0.0
        %v515 = vmax.f32 %v485, 0.0
        %v516 = vmax.f32 %v490, 0.0
        %v517 = vmax.f32 %v495, 0.0
        %v518 = vmax.f32 %v500, 0.0
        %v519 = vld [vmem:[%s3] sm:$0xff]
        %v520 = vld [vmem:[%s3 + $0x8] sm:$0xff]
        %v521 = vld [vmem:[%s3 + $0x10] sm:$0xff]
        %v522 = vld [vmem:[%s3 + $0x18] sm:$0xff]
        %v523 = vld [vmem:[%s3 + $0x20] sm:$0xff]
        %v524 = vld [vmem:[%s3 + $0x28] sm:$0xff]
        %v525 = vld [vmem:[%s3 + $0x30] sm:$0xff]
        %v526 = vld [vmem:[%s3 + $0x38] sm:$0xff]
        %v527 = vld [vmem:[%s4] sm:$0x1]
        %v529 = vlaneseq
        %v530 = vshrl.u32 %v529, 7
        %v531 = vsub.s32 0, %v530
        %v532 = vrot.slane %v527, %v531
        %vm534 = vcmask 523264
        %v536 = vsel %vm534, %v503, 0
        %v539 = vsel %vm534, %v504, 0
        %v542 = vsel %vm534, %v505, 0
        %v545 = vsel %vm534, %v506, 0
        %v548 = vsel %vm534, %v507, 0
        %v551 = vsel %vm534, %v508, 0
        %v554 = vsel %vm534, %v509, 0
        %v557 = vsel %vm534, %v510, 0
        %v560 = vsel %vm534, %v511, 0
        %v563 = vsel %vm534, %v512, 0
        %v566 = vsel %vm534, %v513, 0
        %v569 = vsel %vm534, %v514, 0
        %v572 = vsel %vm534, %v515, 0
        %v575 = vsel %vm534, %v516, 0
        %v578 = vsel %vm534, %v517, 0
        %v581 = vsel %vm534, %v518, 0
        %583 = vmatprep.subr.mxu0 0.0
        %584 = vmatpush1.msra.mxu0 0.0
        %585 = vmatprep.subr.mxu0 0.0
        %586 = vmatpush1.msra.mxu0 0.0
        %587 = vmatprep.subr.mxu0 0.0
        %588 = vmatpush1.msra.mxu0 0.0
        %589 = vmatprep.subr.mxu0 0.0
        %590 = vmatpush1.msra.mxu0 0.0
        %591 = vmatprep.subr.mxu0 0.0
        %592 = vmatpush1.msra.mxu0 0.0
        %593 = vmatprep.subr.mxu0 0.0
        %594 = vmatpush1.msra.mxu0 0.0
        %595 = vmatprep.subr.mxu0 0.0
        %596 = vmatpush1.msra.mxu0 0.0
        %597 = vmatprep.subr.mxu0 0.0
        %598 = vmatpush1.msra.mxu0 0.0
        %599 = vmatprep.subr.mxu0 0.0
        %600 = vmatpush1.msra.mxu0 %v526
        %601 = vmatprep.subr.mxu0 0.0
        %602 = vmatpush1.msra.mxu0 %v525
        %603 = vmatprep.subr.mxu0 0.0
        %604 = vmatpush1.msra.mxu0 %v524
        %605 = vmatprep.subr.mxu0 0.0
        %606 = vmatpush1.msra.mxu0 %v523
        %607 = vmatprep.subr.mxu0 0.0
        %608 = vmatpush1.msra.mxu0 %v522
        %609 = vmatprep.subr.mxu0 0.0
        %610 = vmatpush1.msra.mxu0 %v521
        %611 = vmatprep.subr.mxu0 0.0
        %612 = vmatpush1.msra.mxu0 %v520
        %613 = vmatprep.subr.mxu0 0.0
        %614 = vmatpush1.msra.mxu0 %v519
        %615 = vmatprep.subr.mxu0 0.0
        %616 = vmatpush2.msra.mxu0 0.0
        %617 = vmatprep.subr.mxu0 0.0
        %618 = vmatpush2.msra.mxu0 0.0
        %619 = vmatprep.subr.mxu0 0.0
        %620 = vmatpush2.msra.mxu0 0.0
        %621 = vmatprep.subr.mxu0 0.0
        %622 = vmatpush2.msra.mxu0 0.0
        %623 = vmatprep.subr.mxu0 0.0
        %624 = vmatpush2.msra.mxu0 0.0
        %625 = vmatprep.subr.mxu0 0.0
        %626 = vmatpush2.msra.mxu0 0.0
        %627 = vmatprep.subr.mxu0 0.0
        %628 = vmatpush2.msra.mxu0 0.0
        %629 = vmatprep.subr.mxu0 0.0
        %630 = vmatpush2.msra.mxu0 0.0
        %631 = vmatprep.subr.mxu0 0.0
        %632 = vmatpush2.msra.mxu0 0.0
        %633 = vmatprep.subr.mxu0 0.0
        %634 = vmatpush2.msra.mxu0 0.0
        %635 = vmatprep.subr.mxu0 0.0
        %636 = vmatpush2.msra.mxu0 0.0
        %637 = vmatprep.subr.mxu0 0.0
        %638 = vmatpush2.msra.mxu0 0.0
        %639 = vmatprep.subr.mxu0 0.0
        %640 = vmatpush2.msra.mxu0 0.0
        %641 = vmatprep.subr.mxu0 0.0
        %642 = vmatpush2.msra.mxu0 0.0
        %643 = vmatprep.subr.mxu0 0.0
        %644 = vmatpush2.msra.mxu0 0.0
        %645 = vmatprep.subr.mxu0 0.0
        %646 = vmatpush2.msra.mxu0 0.0
        %647 = vmatprep.mubr.f32.mxu0 0.0
        %648 = vmatmul.mubr.f32.gmra.mxu0 %v536
        %v649 = vpop.f32.mrf.mxu0
        %v650 = vadd.f32 %v532, %v649
        %v651 = vpop.f32.mrf.mxu0
        %652 = vmatprep.mubr.f32.mxu0 0.0
        %653 = vmatmul.mubr.f32.gmra.mxu0 %v539
        %v654 = vpop.f32.mrf.mxu0
        %v655 = vadd.f32 %v532, %v654
        %v656 = vpop.f32.mrf.mxu0
        %657 = vmatprep.mubr.f32.mxu0 0.0
        %658 = vmatmul.mubr.f32.gmra.mxu0 %v542
        %v659 = vpop.f32.mrf.mxu0
        %v660 = vadd.f32 %v532, %v659
        %v661 = vpop.f32.mrf.mxu0
        %662 = vmatprep.mubr.f32.mxu0 0.0
        %663 = vmatmul.mubr.f32.gmra.mxu0 %v545
        %v664 = vpop.f32.mrf.mxu0
        %v665 = vadd.f32 %v532, %v664
        %v666 = vpop.f32.mrf.mxu0
        %667 = vmatprep.mubr.f32.mxu0 0.0
        %668 = vmatmul.mubr.f32.gmra.mxu0 %v548
        %v669 = vpop.f32.mrf.mxu0
        %v670 = vadd.f32 %v532, %v669
        %v671 = vpop.f32.mrf.mxu0
        %672 = vmatprep.mubr.f32.mxu0 0.0
        %673 = vmatmul.mubr.f32.gmra.mxu0 %v551
        %v674 = vpop.f32.mrf.mxu0
        %v675 = vadd.f32 %v532, %v674
        %v676 = vpop.f32.mrf.mxu0
        %677 = vmatprep.mubr.f32.mxu0 0.0
        %678 = vmatmul.mubr.f32.gmra.mxu0 %v554
        %v679 = vpop.f32.mrf.mxu0
        %v680 = vadd.f32 %v532, %v679
        %v681 = vpop.f32.mrf.mxu0
        %682 = vmatprep.mubr.f32.mxu0 0.0
        %683 = vmatmul.mubr.f32.gmra.mxu0 %v557
        %v684 = vpop.f32.mrf.mxu0
        %v685 = vadd.f32 %v532, %v684
        %v686 = vpop.f32.mrf.mxu0
        %687 = vmatprep.mubr.f32.mxu0 0.0
        %688 = vmatmul.mubr.f32.gmra.mxu0 %v560
        %v689 = vpop.f32.mrf.mxu0
        %v690 = vadd.f32 %v532, %v689
        %v691 = vpop.f32.mrf.mxu0
        %692 = vmatprep.mubr.f32.mxu0 0.0
        %693 = vmatmul.mubr.f32.gmra.mxu0 %v563
        %v694 = vpop.f32.mrf.mxu0
        %v695 = vadd.f32 %v532, %v694
        %v696 = vpop.f32.mrf.mxu0
        %697 = vmatprep.mubr.f32.mxu0 0.0
        %698 = vmatmul.mubr.f32.gmra.mxu0 %v566
        %v699 = vpop.f32.mrf.mxu0
        %v700 = vadd.f32 %v532, %v699
        %v701 = vpop.f32.mrf.mxu0
        %702 = vmatprep.mubr.f32.mxu0 0.0
        %703 = vmatmul.mubr.f32.gmra.mxu0 %v569
        %v704 = vpop.f32.mrf.mxu0
        %v705 = vadd.f32 %v532, %v704
        %v706 = vpop.f32.mrf.mxu0
        %707 = vmatprep.mubr.f32.mxu0 0.0
        %708 = vmatmul.mubr.f32.gmra.mxu0 %v572
        %v709 = vpop.f32.mrf.mxu0
        %v710 = vadd.f32 %v532, %v709
        %v711 = vpop.f32.mrf.mxu0
        %712 = vmatprep.mubr.f32.mxu0 0.0
        %713 = vmatmul.mubr.f32.gmra.mxu0 %v575
        %v714 = vpop.f32.mrf.mxu0
        %v715 = vadd.f32 %v532, %v714
        %v716 = vpop.f32.mrf.mxu0
        %717 = vmatprep.mubr.f32.mxu0 0.0
        %718 = vmatmul.mubr.f32.gmra.mxu0 %v578
        %v719 = vpop.f32.mrf.mxu0
        %v720 = vadd.f32 %v532, %v719
        %v721 = vpop.f32.mrf.mxu0
        %722 = vmatprep.mubr.f32.mxu0 0.0
        %723 = vmatmul.mubr.f32.gmra.mxu0 %v581
        %v724 = vpop.f32.mrf.mxu0
        %v725 = vadd.f32 %v532, %v724
        %v726 = vpop.f32.mrf.mxu0
        %727 = vdwg.mxu0
        %v728 = vmax.f32 %v650, 0.0
        %v729 = vmax.f32 %v655, 0.0
        %v730 = vmax.f32 %v660, 0.0
        %v731 = vmax.f32 %v665, 0.0
        %v732 = vmax.f32 %v670, 0.0
        %v733 = vmax.f32 %v675, 0.0
        %v734 = vmax.f32 %v680, 0.0
        %v735 = vmax.f32 %v685, 0.0
        %v736 = vmax.f32 %v690, 0.0
        %v737 = vmax.f32 %v695, 0.0
        %v738 = vmax.f32 %v700, 0.0
        %v739 = vmax.f32 %v705, 0.0
        %v740 = vmax.f32 %v710, 0.0
        %v741 = vmax.f32 %v715, 0.0
        %v742 = vmax.f32 %v720, 0.0
        %v743 = vmax.f32 %v725, 0.0
        %v744 = vld [vmem:[%s5] sm:$0xff]
        %v745 = vld [vmem:[%s5 + $0x8] sm:$0xff]
        %v746 = vld [vmem:[%s5 + $0x10] sm:$0xff]
        %v747 = vld [vmem:[%s5 + $0x18] sm:$0xff]
        %v748 = vld [vmem:[%s6] sm:$0x3]
        %750 = vset.pattern.permute.xlu0 0
        %751 = vperm.xlu0 %750, %v748
        %v752 = vpop.permute.xlu0 %751
        %754 = vxpose.xlu0.b32.start [1/16] %v744, 128
        %755 = vxpose.xlu0.b32.cont [2/16] %v745, 128
        %756 = vxpose.xlu0.b32.cont [3/16] %v746, 128
        %757 = vxpose.xlu0.b32.cont [4/16] %v747, 128
        %758 = vxpose.xlu0.b32.cont [5/16] 0.0, 128
        %759 = vxpose.xlu0.b32.cont [6/16] 0.0, 128
        %760 = vxpose.xlu0.b32.cont [7/16] 0.0, 128
        %761 = vxpose.xlu0.b32.cont [8/16] 0.0, 128
        %762 = vxpose.xlu0.b32.cont [9/16] 0.0, 128
        %763 = vxpose.xlu0.b32.cont [10/16] 0.0, 128
        %764 = vxpose.xlu0.b32.cont [11/16] 0.0, 128
        %765 = vxpose.xlu0.b32.cont [12/16] 0.0, 128
        %766 = vxpose.xlu0.b32.cont [13/16] 0.0, 128
        %767 = vxpose.xlu0.b32.cont [14/16] 0.0, 128
        %768 = vxpose.xlu0.b32.cont [15/16] 0.0, 128
        %769 = vxpose.xlu0.b32.end [16/16] 0.0, 128
        %v770 = vpop.trf.xlu0
        %v771 = vpop.trf.xlu0
        %v772 = vpop.trf.xlu0
        %v773 = vpop.trf.xlu0
        %v774 = vpop.trf.xlu0
        %v775 = vpop.trf.xlu0
        %v776 = vpop.trf.xlu0
        %v777 = vpop.trf.xlu0
        %v778 = vpop.trf.xlu0
        %v779 = vpop.trf.xlu0
        %v780 = vpop.trf.xlu0
        %v781 = vpop.trf.xlu0
        %v782 = vpop.trf.xlu0
        %v783 = vpop.trf.xlu0
        %v784 = vpop.trf.xlu0
        %v785 = vpop.trf.xlu0
        %vm786 = vcmask 261120
        %v788 = vsel %vm786, %v770, 0
        %v791 = vsel %vm786, %v728, 0
        %v794 = vsel %vm786, %v729, 0
        %v797 = vsel %vm786, %v730, 0
        %v800 = vsel %vm786, %v731, 0
        %v803 = vsel %vm786, %v732, 0
        %v806 = vsel %vm786, %v733, 0
        %v809 = vsel %vm786, %v734, 0
        %v812 = vsel %vm786, %v735, 0
        %v815 = vsel %vm786, %v736, 0
        %v818 = vsel %vm786, %v737, 0
        %v821 = vsel %vm786, %v738, 0
        %v824 = vsel %vm786, %v739, 0
        %v827 = vsel %vm786, %v740, 0
        %v830 = vsel %vm786, %v741, 0
        %v833 = vsel %vm786, %v742, 0
        %v836 = vsel %vm786, %v743, 0
        %838 = vmatprep.subr.mxu0 0.0
        %839 = vmatpush1.xpose.msra.mxu0 %v836
        %840 = vmatprep.subr.mxu0 0.0
        %841 = vmatpush1.xpose.msra.mxu0 %v833
        %842 = vmatprep.subr.mxu0 0.0
        %843 = vmatpush1.xpose.msra.mxu0 %v830
        %844 = vmatprep.subr.mxu0 0.0
        %845 = vmatpush1.xpose.msra.mxu0 %v827
        %846 = vmatprep.subr.mxu0 0.0
        %847 = vmatpush1.xpose.msra.mxu0 %v824
        %848 = vmatprep.subr.mxu0 0.0
        %849 = vmatpush1.xpose.msra.mxu0 %v821
        %850 = vmatprep.subr.mxu0 0.0
        %851 = vmatpush1.xpose.msra.mxu0 %v818
        %852 = vmatprep.subr.mxu0 0.0
        %853 = vmatpush1.xpose.msra.mxu0 %v815
        %854 = vmatprep.subr.mxu0 0.0
        %855 = vmatpush1.xpose.msra.mxu0 %v812
        %856 = vmatprep.subr.mxu0 0.0
        %857 = vmatpush1.xpose.msra.mxu0 %v809
        %858 = vmatprep.subr.mxu0 0.0
        %859 = vmatpush1.xpose.msra.mxu0 %v806
        %860 = vmatprep.subr.mxu0 0.0
        %861 = vmatpush1.xpose.msra.mxu0 %v803
        %862 = vmatprep.subr.mxu0 0.0
        %863 = vmatpush1.xpose.msra.mxu0 %v800
        %864 = vmatprep.subr.mxu0 0.0
        %865 = vmatpush1.xpose.msra.mxu0 %v797
        %866 = vmatprep.subr.mxu0 0.0
        %867 = vmatpush1.xpose.msra.mxu0 %v794
        %868 = vmatprep.subr.mxu0 0.0
        %869 = vmatpush1.xpose.msra.mxu0 %v791
        %870 = vmatprep.subr.mxu0 0.0
        %871 = vmatpush2.xpose.msra.mxu0 0.0
        %872 = vmatprep.subr.mxu0 0.0
        %873 = vmatpush2.xpose.msra.mxu0 0.0
        %874 = vmatprep.subr.mxu0 0.0
        %875 = vmatpush2.xpose.msra.mxu0 0.0
        %876 = vmatprep.subr.mxu0 0.0
        %877 = vmatpush2.xpose.msra.mxu0 0.0
        %878 = vmatprep.subr.mxu0 0.0
        %879 = vmatpush2.xpose.msra.mxu0 0.0
        %880 = vmatprep.subr.mxu0 0.0
        %881 = vmatpush2.xpose.msra.mxu0 0.0
        %882 = vmatprep.subr.mxu0 0.0
        %883 = vmatpush2.xpose.msra.mxu0 0.0
        %884 = vmatprep.subr.mxu0 0.0
        %885 = vmatpush2.xpose.msra.mxu0 0.0
        %886 = vmatprep.subr.mxu0 0.0
        %887 = vmatpush2.xpose.msra.mxu0 0.0
        %888 = vmatprep.subr.mxu0 0.0
        %889 = vmatpush2.xpose.msra.mxu0 0.0
        %890 = vmatprep.subr.mxu0 0.0
        %891 = vmatpush2.xpose.msra.mxu0 0.0
        %892 = vmatprep.subr.mxu0 0.0
        %893 = vmatpush2.xpose.msra.mxu0 0.0
        %894 = vmatprep.subr.mxu0 0.0
        %895 = vmatpush2.xpose.msra.mxu0 0.0
        %896 = vmatprep.subr.mxu0 0.0
        %897 = vmatpush2.xpose.msra.mxu0 0.0
        %898 = vmatprep.subr.mxu0 0.0
        %899 = vmatpush2.xpose.msra.mxu0 0.0
        %900 = vmatprep.subr.mxu0 0.0
        %901 = vmatpush2.xpose.msra.mxu0 0.0
        %902 = vmatprep.mubr.f32.mxu0 0.0
        %903 = vmatmul.mubr.f32.gmra.mxu0 %v788
        %v904 = vpop.f32.mrf.mxu0
        %v905 = vadd.f32 %v752, %v904
        %v906 = vpop.f32.mrf.mxu0
        %907 = vdwg.mxu0
        %908 = vst [vmem:[%s272] sm:$0x3] %v905
        %s909 = sand.u32 %s181, 1
        %s910 = scalar_lea.sflag [#allocation3], %s909
        %s911 = sand.u32 %s181, 1
        %s912 = smul.addr %s911, 2
        %s913 = scalar_lea.vmem [#allocation2], %s912
        // Predicated region
        $region49: #{tpu_custom_call.1} parent=47 // pred_check
          %p914 = pneg %p191
        $region50: #{tpu_custom_call.1} parent=47 // pred_check_branch
          %916 = sbr.rel (%p914) target = $region52
        $region51: #{tpu_custom_call.1} parent=47 // pred_region
          %s918 = ssub.s32 32, 32
          %919 = vsyncadd %s910, %s918
          %s920 = smul.addr %s21, 32
          %s921 = scalar_lea.hbm %s7, %s920
          %s923 = sshll.u32 %s913, 4
          %s924 = int_to_ptr.vmem [resolvable:$true] %s923
          %926 = dma.vmem_to_hbm [thread:$0]  %s924, 32, %s921, %s910
        $region52: #{tpu_custom_call.1} parent=47 // pred_fallthru
          _
      $region48: #{tpu_custom_call.1} parent=5 // pred_fallthru
        _
      %p927 = scmp.le.s32.totalorder 2, %s16
      // Predicated region
      $region53: #{tpu_custom_call.1} parent=5 // pred_check
        %p928 = pneg %p927
      $region54: #{tpu_custom_call.1} parent=5 // pred_check_branch
        %930 = sbr.rel (%p928) target = $region56
      $region55: #{tpu_custom_call.1} parent=5 // pred_region
        %s931 = ssub.s32 %s16, 2
        // Predicated region
        $region57: #{tpu_custom_call.1} parent=55 // pred_check
          %p932 = pneg %p197
        $region58: #{tpu_custom_call.1} parent=55 // pred_check_branch
          %934 = sbr.rel (%p932) target = $region60
        $region59: #{tpu_custom_call.1} parent=55 // pred_region
          %s935 = sand.u32 %s182, 1
          %s936 = scalar_lea.sflag [#allocation3], %s935
          %s937 = sand.u32 %s182, 1
          %s938 = smul.addr %s937, 2
          %s939 = scalar_lea.vmem [#allocation2], %s938
          %940 = dma.done %s936, 32
        $region60: #{tpu_custom_call.1} parent=55 // pred_fallthru
          _
      $region56: #{tpu_custom_call.1} parent=5 // pred_fallthru
        _
    $region6: #{tpu_custom_call.1} parent=1 // loop_footer
      %s20 = sadd.s32 1, %s16
    $region7: #{tpu_custom_call.1} parent=1 // loop_footer_branch
      %15 = sbr.rel target = $region3
    $region8: #{tpu_custom_call.1} parent=1 // loop_exit
      _
    %941 = vsyncpa [#allocation3], 1
    %s942 = scalar_lea.sflag [#allocation3], 1
    %943 = vsyncpa %s942, 1

</llo_original>
